<compile_context>
chip_gen: v7x
topology: tpu7x:2x2x1
jax: 0.10.0
libtpu: 0.0.40
codegen_flags: <defaults>
</compile_context>

<pallas_src>
import functools

import jax
import jax.numpy as jnp
from jax.experimental import pallas as pl
from jax.experimental.pallas import tpu as pltpu


LANE = 128                     # pad feature/class dims to lane width


def _round_up(v, m):
    return (v + m - 1) // m * m


def _pad_to(a, shape):
    return jnp.pad(a, [(0, s - d) for d, s in zip(a.shape, shape)])


def _vmem_capacity_bytes():
    """Per-core VMEM capacity; falls back to the v7x 64 MiB floor."""
    try:
        return int(pltpu.get_tpu_info().vmem_capacity_bytes)
    except Exception:
        return 64 * 1024 * 1024


def _choose_row_tile(n8, f_pad, vmem_cap):
    """Row-tile for the streamed A_norm strip in the tiled (large-graph) path.

    Small graphs: split into >=2 tiles so both v7x TensorCores get work.
    Large graphs: size the double-buffered bf16 strip from the VMEM capacity,
    leaving room for the (double-buffered) resident x operand; cap at 512 rows
    (measured mem-bound sweet spot on v5e/v6e).
    """
    if n8 <= 1024:
        return max(8, _round_up(n8 // 2, 8))
    x_bytes = 2 * n8 * f_pad * 2                 # resident x, double-buffered, bf16
    budget = max(int(0.55 * vmem_cap) - x_bytes, 4 * 1024 * 1024)
    tm = budget // (2 * 2 * n8)                  # 2 buffers * 2 B/elem * n8 cols
    tm = (min(512, tm) // 64) * 64
    return max(64, tm)


_VMEM_SPEC = pl.BlockSpec(memory_space=pltpu.MemorySpace.VMEM)


# ----------------------------------------------------------------------------
# Pallas kernels
# ----------------------------------------------------------------------------
def _fused_forward_kernel(a_ref, x_ref,
                          w1l_ref, w1r_ref, s1_ref, t1_ref,
                          w2l_ref, w2r_ref, s2_ref, t2_ref,
                          w3l_ref, w3r_ref, s3_ref, t3_ref,
                          p_ref, invc_ref, wc_ref, bc_ref,
                          out_ref, hpool_ref):
    """Whole forward with the bf16 adjacency resident in VMEM.

    Per layer (SAGEConv mean aggr, bias folded into BN shift):
        h = ReLU( (A_norm @ h) @ W_l + h @ W_r ) * scale + shift
    Then global_mean_pool as a 0/1 bf16 matmul scaled by 1/count, and the
    linear classifier.
    """
    a = a_ref[...]

    def layer(h_in, wl_ref, wr_ref, s_ref, t_ref):
        agg = jnp.dot(a, h_in, preferred_element_type=jnp.float32)
        h = jnp.dot(agg.astype(jnp.bfloat16), wl_ref[...],
                    preferred_element_type=jnp.float32)
        h = h + jnp.dot(h_in, wr_ref[...], preferred_element_type=jnp.float32)
        h = h * s_ref[...] + t_ref[...]
        return jnp.maximum(h, 0.0).astype(jnp.bfloat16)

    h = layer(x_ref[...], w1l_ref, w1r_ref, s1_ref, t1_ref)
    h = layer(h, w2l_ref, w2r_ref, s2_ref, t2_ref)
    h = layer(h, w3l_ref, w3r_ref, s3_ref, t3_ref)

    # global_mean_pool: exact 0/1 bf16 matmul, then divide by counts in f32.
    hp = jnp.dot(p_ref[...], h, preferred_element_type=jnp.float32)
    hp = hp * invc_ref[...]
    hpool_ref[...] = hp
    out_ref[...] = (jnp.dot(hp, wc_ref[...], preferred_element_type=jnp.float32)
                    + bc_ref[...])


def _sage_bn_relu_kernel(a_ref, x_ref, xs_ref, wl_ref, wr_ref,
                         scale_ref, shift_ref, o_ref):
    """One SAGEConv + BatchNorm + ReLU block on a row strip of nodes (tiled path).

    a_ref  : (tm, N)  row strip of the row-normalized adjacency (bf16)
    x_ref  : (N, F)   full feature matrix, resident (bf16)
    xs_ref : (tm, F)  self features for this row strip (BlockSpec-pipelined)
    """
    agg = jnp.dot(a_ref[...], x_ref[...], preferred_element_type=jnp.float32)
    h = jnp.dot(agg.astype(jnp.bfloat16), wl_ref[...],
                preferred_element_type=jnp.float32)
    h = h + jnp.dot(xs_ref[...], wr_ref[...], preferred_element_type=jnp.float32)
    h = h * scale_ref[...] + shift_ref[...]
    o_ref[...] = jnp.maximum(h, 0.0).astype(o_ref.dtype)


def _pool_classifier_kernel(p_ref, invc_ref, h_ref, wc_ref, bc_ref,
                            out_ref, hpool_ref):
    """global_mean_pool (0/1 bf16 matmul, f32 count-scale) + linear classifier."""
    hp = jnp.dot(p_ref[...], h_ref[...], preferred_element_type=jnp.float32)
    hp = hp * invc_ref[...]
    hpool_ref[...] = hp
    out_ref[...] = (jnp.dot(hp, wc_ref[...], preferred_element_type=jnp.float32)
                    + bc_ref[...])


# ----------------------------------------------------------------------------
# pallas_call wrappers
# ----------------------------------------------------------------------------
def _fused_forward(a_norm, x, layers, pool01, inv_cnt, wc, bc, *, vmem_limit):
    n_pad, f_pad = x.shape
    h_pad = layers[0][0].shape[1]
    g_pad = pool01.shape[0]
    c_pad = wc.shape[1]

    flops = 0
    fin = f_pad
    for _ in layers:
        flops += 2 * n_pad * n_pad * fin + 4 * n_pad * fin * h_pad
        fin = h_pad
    flops += 2 * g_pad * n_pad * h_pad + 2 * g_pad * h_pad * c_pad
    bytes_acc = (n_pad * n_pad * 2 + n_pad * f_pad * 2
                 + 4 * n_pad * h_pad * 2 + g_pad * n_pad * 2)

    flat = []
    for (wl, wr, s, t) in layers:
        flat += [wl, wr, s, t]

    return pl.pallas_call(
        _fused_forward_kernel,
        out_shape=(jax.ShapeDtypeStruct((g_pad, c_pad), jnp.float32),
                   jax.ShapeDtypeStruct((g_pad, h_pad), jnp.float32)),
        in_specs=[_VMEM_SPEC] * 18,
        out_specs=(_VMEM_SPEC, _VMEM_SPEC),
        compiler_params=pltpu.CompilerParams(vmem_limit_bytes=vmem_limit),
        cost_estimate=pl.CostEstimate(flops=int(flops), transcendentals=0,
                                      bytes_accessed=int(bytes_acc)),
    )(a_norm, x, *flat, pool01, inv_cnt, wc, bc)


def _sage_layer_tiled(a_norm, x, wl, wr, scale, shift, *, tm, vmem_limit):
    n_pad = a_norm.shape[0]
    f_pad = x.shape[1]
    h_pad = wl.shape[1]
    grid = (n_pad // tm,)

    flops = 2 * n_pad * n_pad * f_pad + 4 * n_pad * f_pad * h_pad
    bytes_acc = (n_pad * n_pad * 2 + 2 * n_pad * f_pad * 2
                 + 2 * f_pad * h_pad * 2 + n_pad * h_pad * 2)

    return pl.pallas_call(
        _sage_bn_relu_kernel,
        out_shape=jax.ShapeDtypeStruct((n_pad, h_pad), jnp.bfloat16),
        grid=grid,
        in_specs=[
            pl.BlockSpec((tm, n_pad), lambda i: (i, 0)),      # A_norm row strip
            pl.BlockSpec((n_pad, f_pad), lambda i: (0, 0)),   # x, resident
            pl.BlockSpec((tm, f_pad), lambda i: (i, 0)),      # x self rows
            pl.BlockSpec((f_pad, h_pad), lambda i: (0, 0)),   # W_l
            pl.BlockSpec((f_pad, h_pad), lambda i: (0, 0)),   # W_r
            pl.BlockSpec((1, h_pad), lambda i: (0, 0)),       # BN scale
            pl.BlockSpec((1, h_pad), lambda i: (0, 0)),       # BN shift (+bias)
        ],
        out_specs=pl.BlockSpec((tm, h_pad), lambda i: (i, 0)),
        compiler_params=pltpu.CompilerParams(
            dimension_semantics=("parallel",),
            vmem_limit_bytes=vmem_limit),
        cost_estimate=pl.CostEstimate(flops=int(flops), transcendentals=0,
                                      bytes_accessed=int(bytes_acc)),
    )(a_norm, x, x, wl, wr, scale, shift)


def _pool_and_classify(pool01, inv_cnt, h, wc, bc, *, vmem_limit):
    g_pad = pool01.shape[0]
    h_pad = h.shape[1]
    c_pad = wc.shape[1]
    return pl.pallas_call(
        _pool_classifier_kernel,
        out_shape=(jax.ShapeDtypeStruct((g_pad, c_pad), jnp.float32),
                   jax.ShapeDtypeStruct((g_pad, h_pad), jnp.float32)),
        in_specs=[_VMEM_SPEC] * 5,
        out_specs=(_VMEM_SPEC, _VMEM_SPEC),
        compiler_params=pltpu.CompilerParams(vmem_limit_bytes=vmem_limit),
    )(pool01, inv_cnt, h, wc, bc)


# ----------------------------------------------------------------------------
# Parameter construction (deterministic, synthetic; logical/unpadded shapes)
# ----------------------------------------------------------------------------
def init_params(key, in_channels, hidden_channels, num_classes):
    def dense(k, fan_in, fan_out):
        bound = 1.0 / jnp.sqrt(jnp.float32(fan_in))
        return jax.random.uniform(k, (fan_in, fan_out), jnp.float32,
                                  -bound, bound)

    ks = jax.random.split(key, 16)
    params = {}
    dims = [(in_channels, hidden_channels),
            (hidden_channels, hidden_channels),
            (hidden_channels, hidden_channels)]
    ki = 0
    eps = 1e-5
    for i, (fi, fo) in enumerate(dims, start=1):
        params[f"conv{i}_wl"] = dense(ks[ki], fi, fo); ki += 1     # lin_l (bias)
        params[f"conv{i}_wr"] = dense(ks[ki], fi, fo); ki += 1     # lin_r
        params[f"conv{i}_b"] = jax.random.uniform(
            ks[ki], (1, fo), jnp.float32, -0.1, 0.1); ki += 1
        gamma = 1.0 + 0.1 * jax.random.normal(ks[ki], (1, fo), jnp.float32); ki += 1
        beta = 0.05 * jnp.ones((1, fo), jnp.float32)
        run_mean = 0.1 * jnp.ones((1, fo), jnp.float32)
        run_var = jnp.ones((1, fo), jnp.float32)
        scale = gamma / jnp.sqrt(run_var + eps)
        params[f"bn{i}_scale"] = scale
        params[f"bn{i}_shift"] = beta - run_mean * scale
    params["cls_w"] = dense(ks[ki], hidden_channels, num_classes); ki += 1
    params["cls_b"] = jax.random.uniform(
        ks[ki], (1, num_classes), jnp.float32, -0.1, 0.1)
    return params


def _prepare_layer(wl, wr, b, scale, shift):
    """Pad to lane width, fold the SAGE bias into the BN shift, cast to bf16."""
    fi, fo = wl.shape
    fi_p = _round_up(fi, LANE)
    fo_p = _round_up(fo, LANE)
    wl_p = _pad_to(wl, (fi_p, fo_p)).astype(jnp.bfloat16)
    wr_p = _pad_to(wr, (fi_p, fo_p)).astype(jnp.bfloat16)
    scale_p = _pad_to(scale, (1, fo_p))
    shift_p = _pad_to(shift + b * scale, (1, fo_p))   # bias fold
    return wl_p, wr_p, scale_p, shift_p


# ----------------------------------------------------------------------------
# Forward wrapper (glue in plain JAX, hot path in Pallas)
# ----------------------------------------------------------------------------
@functools.partial(jax.jit, static_argnames=("num_graphs", "force_tiled"))
def upfd_graphsage_forward(params, x, edge_index, batch, num_graphs,
                           force_tiled=False):
    n, f_in = x.shape
    hidden = params["conv1_wl"].shape[1]
    num_classes = params["cls_w"].shape[1]

    vmem_cap = _vmem_capacity_bytes()
    vmem_limit = int(0.75 * vmem_cap)

    n8 = _round_up(max(n, 8), 8)
    f_in_p = _round_up(f_in, LANE)
    h_p = _round_up(hidden, LANE)
    c_p = _round_up(num_classes, LANE)
    g_p = _round_up(num_graphs, 8)
    f_max = max(f_in_p, h_p)

    # Fuse all three layers + pooling + classifier into one kernel when the
    # resident bf16 adjacency plus intermediates fit comfortably in VMEM.
    fused_bytes = (n8 * n8 * 2                 # A resident (bf16)
                   + 2 * n8 * f_in_p * 4       # x + layer-1 f32 intermediates
                   + 6 * n8 * h_p * 4          # hidden f32/bf16 intermediates
                   + g_p * n8 * 2)             # pooling matrix
    use_fused = (not force_tiled) and fused_bytes <= int(0.45 * vmem_cap)

    if use_fused:
        tm = None
        n_pad = n8
    else:
        tm = _choose_row_tile(n8, f_max, vmem_cap)
        n_pad = _round_up(n, tm)

    src = edge_index[0].astype(jnp.int32)
    dst = edge_index[1].astype(jnp.int32)
    batch = batch.astype(jnp.int32)

    # Row-normalized adjacency (mean over incoming messages src -> dst) built
    # in a single pass: O(E) degree scatter, then 1/deg[dst] scattered straight
    # into a bf16 N x N matrix.  Padded rows/cols stay zero.
    deg = jnp.zeros((n_pad,), jnp.float32).at[dst].add(1.0)
    inv_deg = 1.0 / jnp.maximum(deg, 1.0)
    edge_w = inv_deg[dst].astype(jnp.bfloat16)
    a_norm = jnp.zeros((n_pad, n_pad), jnp.bfloat16).at[dst, src].add(edge_w)

    # global_mean_pool: exact 0/1 bf16 selection matrix + f32 1/count vector.
    node_ids = jnp.arange(n, dtype=jnp.int32)
    pool01 = jnp.zeros((g_p, n_pad), jnp.bfloat16).at[batch, node_ids].set(1.0)
    counts = jnp.zeros((g_p,), jnp.float32).at[batch].add(1.0)
    inv_cnt = (1.0 / jnp.maximum(counts, 1.0)).reshape(g_p, 1)

    # Node features padded to lane width, bf16 activations.
    h0 = _pad_to(x, (n_pad, f_in_p)).astype(jnp.bfloat16)

    layers = []
    for i in (1, 2, 3):
        layers.append(_prepare_layer(
            params[f"conv{i}_wl"], params[f"conv{i}_wr"], params[f"conv{i}_b"],
            params[f"bn{i}_scale"], params[f"bn{i}_shift"]))

    wc = _pad_to(params["cls_w"], (h_p, c_p)).astype(jnp.float32)
    bc = _pad_to(params["cls_b"], (1, c_p))

    if use_fused:
        out_p, hpool_p = _fused_forward(a_norm, h0, layers, pool01, inv_cnt,
                                        wc, bc, vmem_limit=vmem_limit)
    else:
        h = h0
        for (wl_p, wr_p, s_p, t_p) in layers:
            # F.dropout(training=False) -> identity between layers.
            h = _sage_layer_tiled(a_norm, h, wl_p, wr_p, s_p, t_p,
                                  tm=tm, vmem_limit=vmem_limit)
        out_p, hpool_p = _pool_and_classify(pool01, inv_cnt, h, wc, bc,
                                            vmem_limit=vmem_limit)

    # Slice padded lanes / graphs back to logical shapes.
    return (out_p[:num_graphs, :num_classes],
            hpool_p[:num_graphs, :hidden])


# ----------------------------------------------------------------------------
# Pure-JAX f32 reference (for correctness checking of the Pallas paths)
# ----------------------------------------------------------------------------
def _reference_forward(params, x, edge_index, batch, num_graphs):
    n = x.shape[0]
    src, dst = edge_index[0], edge_index[1]
    adj = jnp.zeros((n, n), jnp.float32).at[dst, src].add(1.0)
    deg = adj.sum(axis=1, keepdims=True)
    a_norm = adj / jnp.maximum(deg, 1.0)
    h = x
    for i in (1, 2, 3):
        agg = a_norm @ h
        hh = (agg @ params[f"conv{i}_wl"] + params[f"conv{i}_b"]
              + h @ params[f"conv{i}_wr"])
        hh = hh * params[f"bn{i}_scale"] + params[f"bn{i}_shift"]
        h = jnp.maximum(hh, 0.0)
    pool = jnp.zeros((num_graphs, n), jnp.float32).at[batch, jnp.arange(n)].set(1.0)
    cnt = pool.sum(axis=1, keepdims=True)
    hp = (pool @ h) / jnp.maximum(cnt, 1.0)
    out = hp @ params["cls_w"] + params["cls_b"]
    return out, hp


# ----------------------------------------------------------------------------
# Demo
# ----------------------------------------------------------------------------
if __name__ == "__main__":
    IN_CHANNELS = 8
    HIDDEN = 32
    NUM_CLASSES = 2
    N_NODES = 16
    N_EDGES = 32
    NUM_GRAPHS = 2

    key = jax.random.PRNGKey(0)
    k_par, k_x, k_src, k_dst = jax.random.split(key, 4)

    params = init_params(k_par, IN_CHANNELS, HIDDEN, NUM_CLASSES)

    x = jax.random.normal(k_x, (N_NODES, IN_CHANNELS), jnp.float32)
    # Random edges within each graph (nodes 0..7 -> graph 0, 8..15 -> graph 1).
    src0 = jax.random.randint(k_src, (N_EDGES // 2,), 0, N_NODES // 2)
    dst0 = jax.random.randint(k_dst, (N_EDGES // 2,), 0, N_NODES // 2)
    edge_index = jnp.stack(
        [jnp.concatenate([src0, src0 + N_NODES // 2]),
         jnp.concatenate([dst0, dst0 + N_NODES // 2])]).astype(jnp.int32)
    batch = jnp.concatenate([jnp.zeros(N_NODES // 2, jnp.int32),
                             jnp.ones(N_NODES // 2, jnp.int32)])

    out_ref, hp_ref = _reference_forward(params, x, edge_index, batch, NUM_GRAPHS)

    # Fused single-kernel path (adjacency fits VMEM at this size).
    out_f, hp_f = upfd_graphsage_forward(params, x, edge_index, batch,
                                         num_graphs=NUM_GRAPHS)
    # Tiled multi-kernel path (coverage for the large-graph code path).
    out_t, hp_t = upfd_graphsage_forward(params, x, edge_index, batch,
                                         num_graphs=NUM_GRAPHS, force_tiled=True)
    jax.block_until_ready((out_f, hp_f, out_t, hp_t))

    assert out_f.shape == (NUM_GRAPHS, NUM_CLASSES)
    assert hp_f.shape == (NUM_GRAPHS, HIDDEN)
    for o, h in ((out_f, hp_f), (out_t, hp_t)):
        assert bool(jnp.all(jnp.isfinite(o))) and bool(jnp.all(jnp.isfinite(h)))
        # bf16 adjacency/activations vs f32 reference -> loose tolerances.
        assert bool(jnp.allclose(o, out_ref, rtol=2e-1, atol=1e-1))
        assert bool(jnp.allclose(h, hp_ref, rtol=2e-1, atol=1e-1))
    print("KERNEL_OK")
</pallas_src>

<mosaic_0001>
module attributes {stable_mosaic.version = 11 : i64} {
  func.func private @main(%arg0: i32) attributes {dimension_semantics = [#tpu.dimension_semantics<core_parallel>], iteration_bounds = array<i64: 2>, tpu.core_type = #tpu.core_type<sc_scalar_subcore>, window_params = []} {
    return
  }
}

module attributes {stable_mosaic.version = 11 : i64} {
  func.func private @main(%arg0: i32) attributes {dimension_semantics = [#tpu.dimension_semantics<core_parallel>], iteration_bounds = array<i64: 2>, tpu.core_type = #tpu.core_type<sc_scalar_subcore>, window_params = []} {
    return
  }
}

module attributes {stable_mosaic.version = 11 : i64} {
  func.func @_fused_forward_kernel(%arg0: memref<16x16xbf16, #tpu.memory_space<vmem>>, %arg1: memref<16x128xbf16, #tpu.memory_space<vmem>>, %arg2: memref<128x128xbf16, #tpu.memory_space<vmem>>, %arg3: memref<128x128xbf16, #tpu.memory_space<vmem>>, %arg4: memref<1x128xf32, #tpu.memory_space<vmem>>, %arg5: memref<1x128xf32, #tpu.memory_space<vmem>>, %arg6: memref<128x128xbf16, #tpu.memory_space<vmem>>, %arg7: memref<128x128xbf16, #tpu.memory_space<vmem>>, %arg8: memref<1x128xf32, #tpu.memory_space<vmem>>, %arg9: memref<1x128xf32, #tpu.memory_space<vmem>>, %arg10: memref<128x128xbf16, #tpu.memory_space<vmem>>, %arg11: memref<128x128xbf16, #tpu.memory_space<vmem>>, %arg12: memref<1x128xf32, #tpu.memory_space<vmem>>, %arg13: memref<1x128xf32, #tpu.memory_space<vmem>>, %arg14: memref<8x16xbf16, #tpu.memory_space<vmem>>, %arg15: memref<8x1xf32, #tpu.memory_space<vmem>>, %arg16: memref<128x128xf32, #tpu.memory_space<vmem>>, %arg17: memref<1x128xf32, #tpu.memory_space<vmem>>, %arg18: memref<8x128xf32, #tpu.memory_space<vmem>>, %arg19: memref<8x128xf32, #tpu.memory_space<vmem>>) attributes {dimension_semantics = [], scalar_prefetch = 0 : i64, scratch_operands = 0 : i64, tpu.core_type = #tpu.core_type<tc>} {
    %c0 = arith.constant 0 : index
    %c0_0 = arith.constant 0 : index
    %0 = vector.load %arg0[%c0, %c0_0] : memref<16x16xbf16, #tpu.memory_space<vmem>>, vector<16x16xbf16>
    %c0_1 = arith.constant 0 : index
    %c0_2 = arith.constant 0 : index
    %1 = vector.load %arg1[%c0_1, %c0_2] : memref<16x128xbf16, #tpu.memory_space<vmem>>, vector<16x128xbf16>
    %cst = arith.constant dense<0.000000e+00> : vector<16x128xf32>
    %2 = tpu.matmul %0, %1, %cst {dimension_numbers = #tpu.dot_dimension_numbers<[1], [0], [0], [1], [0, 0, 1, 1], [], []>} : vector<16x16xbf16>, vector<16x128xbf16>, vector<16x128xf32> -> vector<16x128xf32>
    %3 = arith.truncf %2 : vector<16x128xf32> to vector<16x128xbf16>
    %c0_3 = arith.constant 0 : index
    %c0_4 = arith.constant 0 : index
    %4 = vector.load %arg2[%c0_3, %c0_4] : memref<128x128xbf16, #tpu.memory_space<vmem>>, vector<128x128xbf16>
    %cst_5 = arith.constant dense<0.000000e+00> : vector<16x128xf32>
    %5 = tpu.matmul %3, %4, %cst_5 {dimension_numbers = #tpu.dot_dimension_numbers<[1], [0], [0], [1], [0, 0, 1, 1], [], []>} : vector<16x128xbf16>, vector<128x128xbf16>, vector<16x128xf32> -> vector<16x128xf32>
    %c0_6 = arith.constant 0 : index
    %c0_7 = arith.constant 0 : index
    %6 = vector.load %arg3[%c0_6, %c0_7] : memref<128x128xbf16, #tpu.memory_space<vmem>>, vector<128x128xbf16>
    %cst_8 = arith.constant dense<0.000000e+00> : vector<16x128xf32>
    %7 = tpu.matmul %1, %6, %cst_8 {dimension_numbers = #tpu.dot_dimension_numbers<[1], [0], [0], [1], [0, 0, 1, 1], [], []>} : vector<16x128xbf16>, vector<128x128xbf16>, vector<16x128xf32> -> vector<16x128xf32>
    %8 = arith.addf %5, %7 : vector<16x128xf32>
    %c0_9 = arith.constant 0 : index
    %c0_10 = arith.constant 0 : index
    %9 = vector.load %arg4[%c0_9, %c0_10] : memref<1x128xf32, #tpu.memory_space<vmem>>, vector<1x128xf32>
    %10 = vector.broadcast %9 : vector<1x128xf32> to vector<16x128xf32>
    %11 = arith.mulf %8, %10 : vector<16x128xf32>
    %c0_11 = arith.constant 0 : index
    %c0_12 = arith.constant 0 : index
    %12 = vector.load %arg5[%c0_11, %c0_12] : memref<1x128xf32, #tpu.memory_space<vmem>>, vector<1x128xf32>
    %13 = vector.broadcast %12 : vector<1x128xf32> to vector<16x128xf32>
    %14 = arith.addf %11, %13 : vector<16x128xf32>
    %cst_13 = arith.constant 0.000000e+00 : f32
    %15 = vector.broadcast %cst_13 : f32 to vector<16x128xf32>
    %16 = arith.maximumf %14, %15 : vector<16x128xf32>
    %17 = arith.truncf %16 : vector<16x128xf32> to vector<16x128xbf16>
    %cst_14 = arith.constant dense<0.000000e+00> : vector<16x128xf32>
    %18 = tpu.matmul %0, %17, %cst_14 {dimension_numbers = #tpu.dot_dimension_numbers<[1], [0], [0], [1], [0, 0, 1, 1], [], []>} : vector<16x16xbf16>, vector<16x128xbf16>, vector<16x128xf32> -> vector<16x128xf32>
    %19 = arith.truncf %18 : vector<16x128xf32> to vector<16x128xbf16>
    %c0_15 = arith.constant 0 : index
    %c0_16 = arith.constant 0 : index
    %20 = vector.load %arg6[%c0_15, %c0_16] : memref<128x128xbf16, #tpu.memory_space<vmem>>, vector<128x128xbf16>
    %cst_17 = arith.constant dense<0.000000e+00> : vector<16x128xf32>
    %21 = tpu.matmul %19, %20, %cst_17 {dimension_numbers = #tpu.dot_dimension_numbers<[1], [0], [0], [1], [0, 0, 1, 1], [], []>} : vector<16x128xbf16>, vector<128x128xbf16>, vector<16x128xf32> -> vector<16x128xf32>
    %c0_18 = arith.constant 0 : index
    %c0_19 = arith.constant 0 : index
    %22 = vector.load %arg7[%c0_18, %c0_19] : memref<128x128xbf16, #tpu.memory_space<vmem>>, vector<128x128xbf16>
    %cst_20 = arith.constant dense<0.000000e+00> : vector<16x128xf32>
    %23 = tpu.matmul %17, %22, %cst_20 {dimension_numbers = #tpu.dot_dimension_numbers<[1], [0], [0], [1], [0, 0, 1, 1], [], []>} : vector<16x128xbf16>, vector<128x128xbf16>, vector<16x128xf32> -> vector<16x128xf32>
    %24 = arith.addf %21, %23 : vector<16x128xf32>
    %c0_21 = arith.constant 0 : index
    %c0_22 = arith.constant 0 : index
    %25 = vector.load %arg8[%c0_21, %c0_22] : memref<1x128xf32, #tpu.memory_space<vmem>>, vector<1x128xf32>
    %26 = vector.broadcast %25 : vector<1x128xf32> to vector<16x128xf32>
    %27 = arith.mulf %24, %26 : vector<16x128xf32>
    %c0_23 = arith.constant 0 : index
    %c0_24 = arith.constant 0 : index
    %28 = vector.load %arg9[%c0_23, %c0_24] : memref<1x128xf32, #tpu.memory_space<vmem>>, vector<1x128xf32>
    %29 = vector.broadcast %28 : vector<1x128xf32> to vector<16x128xf32>
    %30 = arith.addf %27, %29 : vector<16x128xf32>
    %cst_25 = arith.constant 0.000000e+00 : f32
    %31 = vector.broadcast %cst_25 : f32 to vector<16x128xf32>
    %32 = arith.maximumf %30, %31 : vector<16x128xf32>
    %33 = arith.truncf %32 : vector<16x128xf32> to vector<16x128xbf16>
    %cst_26 = arith.constant dense<0.000000e+00> : vector<16x128xf32>
    %34 = tpu.matmul %0, %33, %cst_26 {dimension_numbers = #tpu.dot_dimension_numbers<[1], [0], [0], [1], [0, 0, 1, 1], [], []>} : vector<16x16xbf16>, vector<16x128xbf16>, vector<16x128xf32> -> vector<16x128xf32>
    %35 = arith.truncf %34 : vector<16x128xf32> to vector<16x128xbf16>
    %c0_27 = arith.constant 0 : index
    %c0_28 = arith.constant 0 : index
    %36 = vector.load %arg10[%c0_27, %c0_28] : memref<128x128xbf16, #tpu.memory_space<vmem>>, vector<128x128xbf16>
    %cst_29 = arith.constant dense<0.000000e+00> : vector<16x128xf32>
    %37 = tpu.matmul %35, %36, %cst_29 {dimension_numbers = #tpu.dot_dimension_numbers<[1], [0], [0], [1], [0, 0, 1, 1], [], []>} : vector<16x128xbf16>, vector<128x128xbf16>, vector<16x128xf32> -> vector<16x128xf32>
    %c0_30 = arith.constant 0 : index
    %c0_31 = arith.constant 0 : index
    %38 = vector.load %arg11[%c0_30, %c0_31] : memref<128x128xbf16, #tpu.memory_space<vmem>>, vector<128x128xbf16>
    %cst_32 = arith.constant dense<0.000000e+00> : vector<16x128xf32>
    %39 = tpu.matmul %33, %38, %cst_32 {dimension_numbers = #tpu.dot_dimension_numbers<[1], [0], [0], [1], [0, 0, 1, 1], [], []>} : vector<16x128xbf16>, vector<128x128xbf16>, vector<16x128xf32> -> vector<16x128xf32>
    %40 = arith.addf %37, %39 : vector<16x128xf32>
    %c0_33 = arith.constant 0 : index
    %c0_34 = arith.constant 0 : index
    %41 = vector.load %arg12[%c0_33, %c0_34] : memref<1x128xf32, #tpu.memory_space<vmem>>, vector<1x128xf32>
    %42 = vector.broadcast %41 : vector<1x128xf32> to vector<16x128xf32>
    %43 = arith.mulf %40, %42 : vector<16x128xf32>
    %c0_35 = arith.constant 0 : index
    %c0_36 = arith.constant 0 : index
    %44 = vector.load %arg13[%c0_35, %c0_36] : memref<1x128xf32, #tpu.memory_space<vmem>>, vector<1x128xf32>
    %45 = vector.broadcast %44 : vector<1x128xf32> to vector<16x128xf32>
    %46 = arith.addf %43, %45 : vector<16x128xf32>
    %cst_37 = arith.constant 0.000000e+00 : f32
    %47 = vector.broadcast %cst_37 : f32 to vector<16x128xf32>
    %48 = arith.maximumf %46, %47 : vector<16x128xf32>
    %49 = arith.truncf %48 : vector<16x128xf32> to vector<16x128xbf16>
    %c0_38 = arith.constant 0 : index
    %c0_39 = arith.constant 0 : index
    %50 = vector.load %arg14[%c0_38, %c0_39] : memref<8x16xbf16, #tpu.memory_space<vmem>>, vector<8x16xbf16>
    %cst_40 = arith.constant dense<0.000000e+00> : vector<8x128xf32>
    %51 = tpu.matmul %50, %49, %cst_40 {dimension_numbers = #tpu.dot_dimension_numbers<[1], [0], [0], [1], [0, 0, 1, 1], [], []>} : vector<8x16xbf16>, vector<16x128xbf16>, vector<8x128xf32> -> vector<8x128xf32>
    %c0_41 = arith.constant 0 : index
    %c0_42 = arith.constant 0 : index
    %52 = vector.load %arg15[%c0_41, %c0_42] : memref<8x1xf32, #tpu.memory_space<vmem>>, vector<8x1xf32>
    %53 = vector.broadcast %52 : vector<8x1xf32> to vector<8x128xf32>
    %54 = arith.mulf %51, %53 : vector<8x128xf32>
    %c0_43 = arith.constant 0 : index
    %c0_44 = arith.constant 0 : index
    %55 = vector.load %arg19[%c0_43, %c0_44] : memref<8x128xf32, #tpu.memory_space<vmem>>, vector<8x128xf32>
    tpu.vector_store %arg19[%c0_43, %c0_44], %54 {strides = array<i32>} : memref<8x128xf32, #tpu.memory_space<vmem>>, vector<8x128xf32>,
    %c0_45 = arith.constant 0 : index
    %c0_46 = arith.constant 0 : index
    %56 = vector.load %arg16[%c0_45, %c0_46] : memref<128x128xf32, #tpu.memory_space<vmem>>, vector<128x128xf32>
    %cst_47 = arith.constant dense<0.000000e+00> : vector<8x128xf32>
    %57 = tpu.matmul %54, %56, %cst_47 {dimension_numbers = #tpu.dot_dimension_numbers<[1], [0], [0], [1], [0, 0, 1, 1], [], []>} : vector<8x128xf32>, vector<128x128xf32>, vector<8x128xf32> -> vector<8x128xf32>
    %c0_48 = arith.constant 0 : index
    %c0_49 = arith.constant 0 : index
    %58 = vector.load %arg17[%c0_48, %c0_49] : memref<1x128xf32, #tpu.memory_space<vmem>>, vector<1x128xf32>
    %59 = vector.broadcast %58 : vector<1x128xf32> to vector<8x128xf32>
    %60 = arith.addf %57, %59 : vector<8x128xf32>
    %c0_50 = arith.constant 0 : index
    %c0_51 = arith.constant 0 : index
    %61 = vector.load %arg18[%c0_50, %c0_51] : memref<8x128xf32, #tpu.memory_space<vmem>>, vector<8x128xf32>
    tpu.vector_store %arg18[%c0_50, %c0_51], %60 {strides = array<i32>} : memref<8x128xf32, #tpu.memory_space<vmem>>, vector<8x128xf32>,
    return
  }
}

</mosaic_0001>

<llo_original>
// kernel: upfd_graphsage_forward.1
$region0: #{upfd_graphsage_forward.1}
  #allocation0 [shape = 'u32[]', space=smem, size = 0x4, offset = 0x4, fixed_abs, tag = 'smem constant byte address 0x4 - core index']
  #allocation1 [shape = 'u32[144,128]{1,0:T(1,128)}', space=vmem, size = 0x12000, scoped, tag = 'internal scratch']
  %s0 = inlined_call_operand.vmem [shape: bf16[16,16], index: 0, kind: input, shape index: {}]
  %s1 = inlined_call_operand.vmem [shape: bf16[16,128], index: 1, kind: input, shape index: {}]
  %s2 = inlined_call_operand.vmem [shape: bf16[128,128], index: 2, kind: input, shape index: {}]
  %s3 = inlined_call_operand.vmem [shape: bf16[128,128], index: 3, kind: input, shape index: {}]
  %s4 = inlined_call_operand.vmem [shape: f32[1,128], index: 4, kind: input, shape index: {}]
  %s5 = inlined_call_operand.vmem [shape: f32[1,128], index: 5, kind: input, shape index: {}]
  %s6 = inlined_call_operand.vmem [shape: bf16[128,128], index: 6, kind: input, shape index: {}]
  %s7 = inlined_call_operand.vmem [shape: bf16[128,128], index: 7, kind: input, shape index: {}]
  %s8 = inlined_call_operand.vmem [shape: f32[1,128], index: 8, kind: input, shape index: {}]
  %s9 = inlined_call_operand.vmem [shape: f32[1,128], index: 9, kind: input, shape index: {}]
  %s10 = inlined_call_operand.vmem [shape: bf16[128,128], index: 10, kind: input, shape index: {}]
  %s11 = inlined_call_operand.vmem [shape: bf16[128,128], index: 11, kind: input, shape index: {}]
  %s12 = inlined_call_operand.vmem [shape: f32[1,128], index: 12, kind: input, shape index: {}]
  %s13 = inlined_call_operand.vmem [shape: f32[1,128], index: 13, kind: input, shape index: {}]
  %s14 = inlined_call_operand.vmem [shape: bf16[8,16], index: 14, kind: input, shape index: {}]
  %s15 = inlined_call_operand.vmem [shape: f32[8,1], index: 15, kind: input, shape index: {}]
  %s16 = inlined_call_operand.vmem [shape: f32[128,128], index: 16, kind: input, shape index: {}]
  %s17 = inlined_call_operand.vmem [shape: f32[1,128], index: 17, kind: input, shape index: {}]
  %s18 = inlined_call_operand.vmem [shape: f32[8,128], index: 18, kind: output, shape index: {0}]
  %s19 = inlined_call_operand.vmem [shape: f32[8,128], index: 19, kind: output, shape index: {1}]
  %20 = xla_tuple %s18, %s19
  %s21 = sld [smem:[#allocation0]]
  $region90: #{upfd_graphsage_forward.1} parent=0
    _
  %s23 = ssub.s32 1, %s21
  %s24 = scalar_select 0, %s23, %s21
  // Predicated region
  $region2: #{upfd_graphsage_forward.1} parent=0 // pred_check
    _
  $region3: #{upfd_graphsage_forward.1} parent=0 // pred_check_branch
    %26 = sbr.rel (0) target = $region5
  $region4: #{upfd_graphsage_forward.1} parent=0 // pred_region
    _
  $region5: #{upfd_graphsage_forward.1} parent=0 // pred_fallthru
    _
  // Predicated region
  $region6: #{upfd_graphsage_forward.1} parent=0 // pred_check
    _
  $region7: #{upfd_graphsage_forward.1} parent=0 // pred_check_branch
    %28 = sbr.rel (0) target = $region9
  $region8: #{upfd_graphsage_forward.1} parent=0 // pred_region
    _
  $region9: #{upfd_graphsage_forward.1} parent=0 // pred_fallthru
    _
  // Predicated region
  $region10: #{upfd_graphsage_forward.1} parent=0 // pred_check
    _
  $region11: #{upfd_graphsage_forward.1} parent=0 // pred_check_branch
    %30 = sbr.rel (0) target = $region13
  $region12: #{upfd_graphsage_forward.1} parent=0 // pred_region
    _
  $region13: #{upfd_graphsage_forward.1} parent=0 // pred_fallthru
    _
  // Predicated region
  $region14: #{upfd_graphsage_forward.1} parent=0 // pred_check
    _
  $region15: #{upfd_graphsage_forward.1} parent=0 // pred_check_branch
    %32 = sbr.rel (0) target = $region17
  $region16: #{upfd_graphsage_forward.1} parent=0 // pred_region
    _
  $region17: #{upfd_graphsage_forward.1} parent=0 // pred_fallthru
    _
  // Predicated region
  $region18: #{upfd_graphsage_forward.1} parent=0 // pred_check
    _
  $region19: #{upfd_graphsage_forward.1} parent=0 // pred_check_branch
    %34 = sbr.rel (0) target = $region21
  $region20: #{upfd_graphsage_forward.1} parent=0 // pred_region
    _
  $region21: #{upfd_graphsage_forward.1} parent=0 // pred_fallthru
    _
  // Predicated region
  $region22: #{upfd_graphsage_forward.1} parent=0 // pred_check
    _
  $region23: #{upfd_graphsage_forward.1} parent=0 // pred_check_branch
    %36 = sbr.rel (0) target = $region25
  $region24: #{upfd_graphsage_forward.1} parent=0 // pred_region
    _
  $region25: #{upfd_graphsage_forward.1} parent=0 // pred_fallthru
    _
  // Predicated region
  $region26: #{upfd_graphsage_forward.1} parent=0 // pred_check
    _
  $region27: #{upfd_graphsage_forward.1} parent=0 // pred_check_branch
    %38 = sbr.rel (0) target = $region29
  $region28: #{upfd_graphsage_forward.1} parent=0 // pred_region
    _
  $region29: #{upfd_graphsage_forward.1} parent=0 // pred_fallthru
    _
  // Predicated region
  $region30: #{upfd_graphsage_forward.1} parent=0 // pred_check
    _
  $region31: #{upfd_graphsage_forward.1} parent=0 // pred_check_branch
    %40 = sbr.rel (0) target = $region33
  $region32: #{upfd_graphsage_forward.1} parent=0 // pred_region
    _
  $region33: #{upfd_graphsage_forward.1} parent=0 // pred_fallthru
    _
  // Predicated region
  $region34: #{upfd_graphsage_forward.1} parent=0 // pred_check
    _
  $region35: #{upfd_graphsage_forward.1} parent=0 // pred_check_branch
    %42 = sbr.rel (0) target = $region37
  $region36: #{upfd_graphsage_forward.1} parent=0 // pred_region
    _
  $region37: #{upfd_graphsage_forward.1} parent=0 // pred_fallthru
    _
  // Predicated region
  $region38: #{upfd_graphsage_forward.1} parent=0 // pred_check
    _
  $region39: #{upfd_graphsage_forward.1} parent=0 // pred_check_branch
    %44 = sbr.rel (0) target = $region41
  $region40: #{upfd_graphsage_forward.1} parent=0 // pred_region
    _
  $region41: #{upfd_graphsage_forward.1} parent=0 // pred_fallthru
    _
  // Predicated region
  $region42: #{upfd_graphsage_forward.1} parent=0 // pred_check
    _
  $region43: #{upfd_graphsage_forward.1} parent=0 // pred_check_branch
    %46 = sbr.rel (0) target = $region45
  $region44: #{upfd_graphsage_forward.1} parent=0 // pred_region
    _
  $region45: #{upfd_graphsage_forward.1} parent=0 // pred_fallthru
    _
  // Predicated region
  $region46: #{upfd_graphsage_forward.1} parent=0 // pred_check
    _
  $region47: #{upfd_graphsage_forward.1} parent=0 // pred_check_branch
    %48 = sbr.rel (0) target = $region49
  $region48: #{upfd_graphsage_forward.1} parent=0 // pred_region
    _
  $region49: #{upfd_graphsage_forward.1} parent=0 // pred_fallthru
    _
  // Predicated region
  $region50: #{upfd_graphsage_forward.1} parent=0 // pred_check
    _
  $region51: #{upfd_graphsage_forward.1} parent=0 // pred_check_branch
    %50 = sbr.rel (0) target = $region53
  $region52: #{upfd_graphsage_forward.1} parent=0 // pred_region
    _
  $region53: #{upfd_graphsage_forward.1} parent=0 // pred_fallthru
    _
  // Predicated region
  $region54: #{upfd_graphsage_forward.1} parent=0 // pred_check
    _
  $region55: #{upfd_graphsage_forward.1} parent=0 // pred_check_branch
    %52 = sbr.rel (0) target = $region57
  $region56: #{upfd_graphsage_forward.1} parent=0 // pred_region
    _
  $region57: #{upfd_graphsage_forward.1} parent=0 // pred_fallthru
    _
  // Predicated region
  $region58: #{upfd_graphsage_forward.1} parent=0 // pred_check
    _
  $region59: #{upfd_graphsage_forward.1} parent=0 // pred_check_branch
    %54 = sbr.rel (0) target = $region61
  $region60: #{upfd_graphsage_forward.1} parent=0 // pred_region
    _
  $region61: #{upfd_graphsage_forward.1} parent=0 // pred_fallthru
    _
  // Predicated region
  $region62: #{upfd_graphsage_forward.1} parent=0 // pred_check
    _
  $region63: #{upfd_graphsage_forward.1} parent=0 // pred_check_branch
    %56 = sbr.rel (0) target = $region65
  $region64: #{upfd_graphsage_forward.1} parent=0 // pred_region
    _
  $region65: #{upfd_graphsage_forward.1} parent=0 // pred_fallthru
    _
  // Predicated region
  $region66: #{upfd_graphsage_forward.1} parent=0 // pred_check
    _
  $region67: #{upfd_graphsage_forward.1} parent=0 // pred_check_branch
    %58 = sbr.rel (0) target = $region69
  $region68: #{upfd_graphsage_forward.1} parent=0 // pred_region
    _
  $region69: #{upfd_graphsage_forward.1} parent=0 // pred_fallthru
    _
  // Predicated region
  $region70: #{upfd_graphsage_forward.1} parent=0 // pred_check
    _
  $region71: #{upfd_graphsage_forward.1} parent=0 // pred_check_branch
    %60 = sbr.rel (0) target = $region73
  $region72: #{upfd_graphsage_forward.1} parent=0 // pred_region
    _
  $region73: #{upfd_graphsage_forward.1} parent=0 // pred_fallthru
    _
  %v62 = vld [vmem:[%s0] sm:$0xf]
  %v63 = vld [vmem:[%s0 + $0x4] sm:$0xf]
  %v64 = vld [vmem:[%s1] sm:$0xf]
  %v65 = vld [vmem:[%s1 + $0x4] sm:$0xf]
  %v68 = vunpack.c.l.b16 %v62
  %v69 = vunpack.c.l.b16 %v63
  %v70 = vpack.c.b16 %v69, %v68
  %v73 = vunpack.c.l.b16 %v64
  %v74 = vunpack.c.l.b16 %v65
  %v75 = vpack.c.b16 %v74, %v73
  %vm77 = vcmask 130048
  %v79 = vsel %vm77, %v70, 0
  %81 = vmatprep.subr.bf16.mxu0 0
  %82 = vmatpush1.bf16.msra.mxu0 %v75
  %83 = vmatprep.subr.bf16.mxu0 0
  %84 = vmatpush1.bf16.msra.mxu0 0
  %85 = vmatprep.subr.bf16.mxu0 0
  %86 = vmatpush1.bf16.msra.mxu0 0
  %87 = vmatprep.subr.bf16.mxu0 0
  %88 = vmatpush1.bf16.msra.mxu0 0
  %89 = vmatprep.subr.bf16.mxu0 0
  %90 = vmatpush1.bf16.msra.mxu0 0
  %91 = vmatprep.subr.bf16.mxu0 0
  %92 = vmatpush1.bf16.msra.mxu0 0
  %93 = vmatprep.subr.bf16.mxu0 0
  %94 = vmatpush1.bf16.msra.mxu0 0
  %95 = vmatprep.subr.bf16.mxu0 0
  %96 = vmatpush1.bf16.msra.mxu0 0
  %97 = vmatprep.subr.bf16.mxu0 0
  %98 = vmatpush1.bf16.msra.mxu0 0
  %99 = vmatprep.subr.bf16.mxu0 0
  %100 = vmatpush1.bf16.msra.mxu0 0
  %101 = vmatprep.subr.bf16.mxu0 0
  %102 = vmatpush1.bf16.msra.mxu0 0
  %103 = vmatprep.subr.bf16.mxu0 0
  %104 = vmatpush1.bf16.msra.mxu0 0
  %105 = vmatprep.subr.bf16.mxu0 0
  %106 = vmatpush1.bf16.msra.mxu0 0
  %107 = vmatprep.subr.bf16.mxu0 0
  %108 = vmatpush1.bf16.msra.mxu0 0
  %109 = vmatprep.subr.bf16.mxu0 0
  %110 = vmatpush1.bf16.msra.mxu0 0
  %111 = vmatprep.subr.bf16.mxu0 0
  %112 = vmatpush1.bf16.msra.mxu0 0
  %113 = vmatprep.mubr.bf16.mxu0 0
  %114 = vmatmul.mubr.bf16.gmra.mrb[0].mxu0 %v79
  %v115 = vpop.f32.mrb[0].mxu0
  %v116 = vadd.f32 0.0, %v115
  %v117 = vpop.f32.mrb[0].mxu0
  %v118 = vpop.f32.mrb[0].mxu0
  %v119 = vadd.f32 0.0, %v118
  %v120 = vpop.f32.mrb[0].mxu0
  %121 = vdwg.mxu0
  %v122 = vpack.c.bf16 %v119, %v116
  %v123 = vld [vmem:[%s2] sm:$0xf]
  %v124 = vld [vmem:[%s2 + $0x4] sm:$0xf]
  %v125 = vld [vmem:[%s2 + $0x8] sm:$0xf]
  %v126 = vld [vmem:[%s2 + $0xc] sm:$0xf]
  %v127 = vld [vmem:[%s2 + $0x10] sm:$0xf]
  %v128 = vld [vmem:[%s2 + $0x14] sm:$0xf]
  %v129 = vld [vmem:[%s2 + $0x18] sm:$0xf]
  %v130 = vld [vmem:[%s2 + $0x1c] sm:$0xf]
  %v131 = vld [vmem:[%s2 + $0x20] sm:$0xf]
  %v132 = vld [vmem:[%s2 + $0x24] sm:$0xf]
  %v133 = vld [vmem:[%s2 + $0x28] sm:$0xf]
  %v134 = vld [vmem:[%s2 + $0x2c] sm:$0xf]
  %v135 = vld [vmem:[%s2 + $0x30] sm:$0xf]
  %v136 = vld [vmem:[%s2 + $0x34] sm:$0xf]
  %v137 = vld [vmem:[%s2 + $0x38] sm:$0xf]
  %v138 = vld [vmem:[%s2 + $0x3c] sm:$0xf]
  %v139 = vld [vmem:[%s3] sm:$0xf]
  %v140 = vld [vmem:[%s3 + $0x4] sm:$0xf]
  %v141 = vld [vmem:[%s3 + $0x8] sm:$0xf]
  %v142 = vld [vmem:[%s3 + $0xc] sm:$0xf]
  %v143 = vld [vmem:[%s3 + $0x10] sm:$0xf]
  %v144 = vld [vmem:[%s3 + $0x14] sm:$0xf]
  %v145 = vld [vmem:[%s3 + $0x18] sm:$0xf]
  %v146 = vld [vmem:[%s3 + $0x1c] sm:$0xf]
  %v147 = vld [vmem:[%s3 + $0x20] sm:$0xf]
  %v148 = vld [vmem:[%s3 + $0x24] sm:$0xf]
  %v149 = vld [vmem:[%s3 + $0x28] sm:$0xf]
  %v150 = vld [vmem:[%s3 + $0x2c] sm:$0xf]
  %v151 = vld [vmem:[%s3 + $0x30] sm:$0xf]
  %v152 = vld [vmem:[%s3 + $0x34] sm:$0xf]
  %v153 = vld [vmem:[%s3 + $0x38] sm:$0xf]
  %v154 = vld [vmem:[%s3 + $0x3c] sm:$0xf]
  %v171 = vunpack.c.l.b16 %v139
  %v172 = vunpack.c.l.b16 %v140
  %v173 = vunpack.c.l.b16 %v141
  %v174 = vunpack.c.l.b16 %v142
  %v175 = vunpack.c.l.b16 %v143
  %v176 = vunpack.c.l.b16 %v144
  %v177 = vunpack.c.l.b16 %v145
  %v178 = vunpack.c.l.b16 %v146
  %v179 = vunpack.c.l.b16 %v147
  %v180 = vunpack.c.l.b16 %v148
  %v181 = vunpack.c.l.b16 %v149
  %v182 = vunpack.c.l.b16 %v150
  %v183 = vunpack.c.l.b16 %v151
  %v184 = vunpack.c.l.b16 %v152
  %v185 = vunpack.c.l.b16 %v153
  %v186 = vunpack.c.l.b16 %v154
  %v187 = vpack.c.b16 %v172, %v171
  %v188 = vpack.c.b16 %v174, %v173
  %v189 = vpack.c.b16 %v176, %v175
  %v190 = vpack.c.b16 %v178, %v177
  %v191 = vpack.c.b16 %v180, %v179
  %v192 = vpack.c.b16 %v182, %v181
  %v193 = vpack.c.b16 %v184, %v183
  %v194 = vpack.c.b16 %v186, %v185
  %203 = vmatprep.subr.bf16.mxu0 0
  %204 = vmatpush1.bf16.msra.mxu0 %v187
  %205 = vmatprep.subr.bf16.mxu0 0
  %206 = vmatpush1.bf16.msra.mxu0 %v188
  %207 = vmatprep.subr.bf16.mxu0 0
  %208 = vmatpush1.bf16.msra.mxu0 %v189
  %209 = vmatprep.subr.bf16.mxu0 0
  %210 = vmatpush1.bf16.msra.mxu0 %v190
  %211 = vmatprep.subr.bf16.mxu0 0
  %212 = vmatpush1.bf16.msra.mxu0 %v191
  %213 = vmatprep.subr.bf16.mxu0 0
  %214 = vmatpush1.bf16.msra.mxu0 %v192
  %215 = vmatprep.subr.bf16.mxu0 0
  %216 = vmatpush1.bf16.msra.mxu0 %v193
  %217 = vmatprep.subr.bf16.mxu0 0
  %218 = vmatpush1.bf16.msra.mxu0 %v194
  %219 = vmatprep.subr.bf16.mxu0 0
  %220 = vmatpush1.bf16.msra.mxu0 0
  %221 = vmatprep.subr.bf16.mxu0 0
  %222 = vmatpush1.bf16.msra.mxu0 0
  %223 = vmatprep.subr.bf16.mxu0 0
  %224 = vmatpush1.bf16.msra.mxu0 0
  %225 = vmatprep.subr.bf16.mxu0 0
  %226 = vmatpush1.bf16.msra.mxu0 0
  %227 = vmatprep.subr.bf16.mxu0 0
  %228 = vmatpush1.bf16.msra.mxu0 0
  %229 = vmatprep.subr.bf16.mxu0 0
  %230 = vmatpush1.bf16.msra.mxu0 0
  %231 = vmatprep.subr.bf16.mxu0 0
  %232 = vmatpush1.bf16.msra.mxu0 0
  %233 = vmatprep.subr.bf16.mxu0 0
  %234 = vmatpush1.bf16.msra.mxu0 0
  %235 = vmatprep.mubr.bf16.mxu0 0
  %236 = vmatmul.mubr.bf16.gmra.mrb[0].mxu0 %v75
  %v237 = vpop.f32.mrb[0].mxu0
  %v238 = vadd.f32 0.0, %v237
  %v239 = vpop.f32.mrb[0].mxu0
  %v240 = vpop.f32.mrb[0].mxu0
  %v241 = vadd.f32 0.0, %v240
  %v242 = vpop.f32.mrb[0].mxu0
  %243 = vdwg.mxu0
  %v260 = vunpack.c.l.b16 %v123
  %v261 = vunpack.c.l.b16 %v124
  %v262 = vunpack.c.l.b16 %v125
  %v263 = vunpack.c.l.b16 %v126
  %v264 = vunpack.c.l.b16 %v127
  %v265 = vunpack.c.l.b16 %v128
  %v266 = vunpack.c.l.b16 %v129
  %v267 = vunpack.c.l.b16 %v130
  %v268 = vunpack.c.l.b16 %v131
  %v269 = vunpack.c.l.b16 %v132
  %v270 = vunpack.c.l.b16 %v133
  %v271 = vunpack.c.l.b16 %v134
  %v272 = vunpack.c.l.b16 %v135
  %v273 = vunpack.c.l.b16 %v136
  %v274 = vunpack.c.l.b16 %v137
  %v275 = vunpack.c.l.b16 %v138
  %v276 = vpack.c.b16 %v261, %v260
  %v277 = vpack.c.b16 %v263, %v262
  %v278 = vpack.c.b16 %v265, %v264
  %v279 = vpack.c.b16 %v267, %v266
  %v280 = vpack.c.b16 %v269, %v268
  %v281 = vpack.c.b16 %v271, %v270
  %v282 = vpack.c.b16 %v273, %v272
  %v283 = vpack.c.b16 %v275, %v274
  %292 = vmatprep.subr.bf16.mxu0 0
  %293 = vmatpush1.bf16.msra.mxu0 %v276
  %294 = vmatprep.subr.bf16.mxu0 0
  %295 = vmatpush1.bf16.msra.mxu0 %v277
  %296 = vmatprep.subr.bf16.mxu0 0
  %297 = vmatpush1.bf16.msra.mxu0 %v278
  %298 = vmatprep.subr.bf16.mxu0 0
  %299 = vmatpush1.bf16.msra.mxu0 %v279
  %300 = vmatprep.subr.bf16.mxu0 0
  %301 = vmatpush1.bf16.msra.mxu0 %v280
  %302 = vmatprep.subr.bf16.mxu0 0
  %303 = vmatpush1.bf16.msra.mxu0 %v281
  %304 = vmatprep.subr.bf16.mxu0 0
  %305 = vmatpush1.bf16.msra.mxu0 %v282
  %306 = vmatprep.subr.bf16.mxu0 0
  %307 = vmatpush1.bf16.msra.mxu0 %v283
  %308 = vmatprep.subr.bf16.mxu0 0
  %309 = vmatpush1.bf16.msra.mxu0 0
  %310 = vmatprep.subr.bf16.mxu0 0
  %311 = vmatpush1.bf16.msra.mxu0 0
  %312 = vmatprep.subr.bf16.mxu0 0
  %313 = vmatpush1.bf16.msra.mxu0 0
  %314 = vmatprep.subr.bf16.mxu0 0
  %315 = vmatpush1.bf16.msra.mxu0 0
  %316 = vmatprep.subr.bf16.mxu0 0
  %317 = vmatpush1.bf16.msra.mxu0 0
  %318 = vmatprep.subr.bf16.mxu0 0
  %319 = vmatpush1.bf16.msra.mxu0 0
  %320 = vmatprep.subr.bf16.mxu0 0
  %321 = vmatpush1.bf16.msra.mxu0 0
  %322 = vmatprep.subr.bf16.mxu0 0
  %323 = vmatpush1.bf16.msra.mxu0 0
  %324 = vmatprep.mubr.bf16.mxu0 0
  %325 = vmatmul.mubr.bf16.gmra.mrb[0].mxu0 %v122
  %v326 = vpop.f32.mrb[0].mxu0
  %v327 = vadd.f32 %v238, %v326
  %v328 = vpop.f32.mrb[0].mxu0
  %v329 = vpop.f32.mrb[0].mxu0
  %v330 = vadd.f32 %v241, %v329
  %v331 = vpop.f32.mrb[0].mxu0
  %332 = vdwg.mxu0
  %v333 = vld [vmem:[%s4] sm:$0x1]
  %v335 = vlaneseq
  %v336 = vshrl.u32 %v335, 7
  %v337 = vsub.s32 0, %v336
  %v338 = vrot.slane %v333, %v337
  %v340 = vmul.f32 %v327, %v338
  %v341 = vmul.f32 %v330, %v338
  %v342 = vld [vmem:[%s5] sm:$0x1]
  %v344 = vlaneseq
  %v345 = vshrl.u32 %v344, 7
  %v346 = vsub.s32 0, %v345
  %v347 = vrot.slane %v342, %v346
  %v349 = vadd.f32 %v340, %v347
  %v350 = vadd.f32 %v341, %v347
  %v351 = vmax.f32 %v349, 0.0
  %v352 = vmax.f32 %v350, 0.0
  %v353 = vpack.c.bf16 %v352, %v351
  %354 = vmatprep.subr.bf16.mxu0 0
  %355 = vmatpush1.bf16.msra.mxu0 %v353
  %356 = vmatprep.subr.bf16.mxu0 0
  %357 = vmatpush1.bf16.msra.mxu0 0
  %358 = vmatprep.subr.bf16.mxu0 0
  %359 = vmatpush1.bf16.msra.mxu0 0
  %360 = vmatprep.subr.bf16.mxu0 0
  %361 = vmatpush1.bf16.msra.mxu0 0
  %362 = vmatprep.subr.bf16.mxu0 0
  %363 = vmatpush1.bf16.msra.mxu0 0
  %364 = vmatprep.subr.bf16.mxu0 0
  %365 = vmatpush1.bf16.msra.mxu0 0
  %366 = vmatprep.subr.bf16.mxu0 0
  %367 = vmatpush1.bf16.msra.mxu0 0
  %368 = vmatprep.subr.bf16.mxu0 0
  %369 = vmatpush1.bf16.msra.mxu0 0
  %370 = vmatprep.subr.bf16.mxu0 0
  %371 = vmatpush1.bf16.msra.mxu0 0
  %372 = vmatprep.subr.bf16.mxu0 0
  %373 = vmatpush1.bf16.msra.mxu0 0
  %374 = vmatprep.subr.bf16.mxu0 0
  %375 = vmatpush1.bf16.msra.mxu0 0
  %376 = vmatprep.subr.bf16.mxu0 0
  %377 = vmatpush1.bf16.msra.mxu0 0
  %378 = vmatprep.subr.bf16.mxu0 0
  %379 = vmatpush1.bf16.msra.mxu0 0
  %380 = vmatprep.subr.bf16.mxu0 0
  %381 = vmatpush1.bf16.msra.mxu0 0
  %382 = vmatprep.subr.bf16.mxu0 0
  %383 = vmatpush1.bf16.msra.mxu0 0
  %384 = vmatprep.subr.bf16.mxu0 0
  %385 = vmatpush1.bf16.msra.mxu0 0
  %386 = vmatprep.mubr.bf16.mxu0 0
  %387 = vmatmul.mubr.bf16.gmra.mrb[0].mxu0 %v79
  %v388 = vpop.f32.mrb[0].mxu0
  %v389 = vadd.f32 0.0, %v388
  %v390 = vpop.f32.mrb[0].mxu0
  %v391 = vpop.f32.mrb[0].mxu0
  %v392 = vadd.f32 0.0, %v391
  %v393 = vpop.f32.mrb[0].mxu0
  %394 = vdwg.mxu0
  %v395 = vpack.c.bf16 %v392, %v389
  %v396 = vld [vmem:[%s6] sm:$0xf]
  %v397 = vld [vmem:[%s6 + $0x4] sm:$0xf]
  %v398 = vld [vmem:[%s6 + $0x8] sm:$0xf]
  %v399 = vld [vmem:[%s6 + $0xc] sm:$0xf]
  %v400 = vld [vmem:[%s6 + $0x10] sm:$0xf]
  %v401 = vld [vmem:[%s6 + $0x14] sm:$0xf]
  %v402 = vld [vmem:[%s6 + $0x18] sm:$0xf]
  %v403 = vld [vmem:[%s6 + $0x1c] sm:$0xf]
  %v404 = vld [vmem:[%s6 + $0x20] sm:$0xf]
  %v405 = vld [vmem:[%s6 + $0x24] sm:$0xf]
  %v406 = vld [vmem:[%s6 + $0x28] sm:$0xf]
  %v407 = vld [vmem:[%s6 + $0x2c] sm:$0xf]
  %v408 = vld [vmem:[%s6 + $0x30] sm:$0xf]
  %v409 = vld [vmem:[%s6 + $0x34] sm:$0xf]
  %v410 = vld [vmem:[%s6 + $0x38] sm:$0xf]
  %v411 = vld [vmem:[%s6 + $0x3c] sm:$0xf]
  %v412 = vld [vmem:[%s7] sm:$0xf]
  %v413 = vld [vmem:[%s7 + $0x4] sm:$0xf]
  %v414 = vld [vmem:[%s7 + $0x8] sm:$0xf]
  %v415 = vld [vmem:[%s7 + $0xc] sm:$0xf]
  %v416 = vld [vmem:[%s7 + $0x10] sm:$0xf]
  %v417 = vld [vmem:[%s7 + $0x14] sm:$0xf]
  %v418 = vld [vmem:[%s7 + $0x18] sm:$0xf]
  %v419 = vld [vmem:[%s7 + $0x1c] sm:$0xf]
  %v420 = vld [vmem:[%s7 + $0x20] sm:$0xf]
  %v421 = vld [vmem:[%s7 + $0x24] sm:$0xf]
  %v422 = vld [vmem:[%s7 + $0x28] sm:$0xf]
  %v423 = vld [vmem:[%s7 + $0x2c] sm:$0xf]
  %v424 = vld [vmem:[%s7 + $0x30] sm:$0xf]
  %v425 = vld [vmem:[%s7 + $0x34] sm:$0xf]
  %v426 = vld [vmem:[%s7 + $0x38] sm:$0xf]
  %v427 = vld [vmem:[%s7 + $0x3c] sm:$0xf]
  %v444 = vunpack.c.l.b16 %v412
  %v445 = vunpack.c.l.b16 %v413
  %v446 = vunpack.c.l.b16 %v414
  %v447 = vunpack.c.l.b16 %v415
  %v448 = vunpack.c.l.b16 %v416
  %v449 = vunpack.c.l.b16 %v417
  %v450 = vunpack.c.l.b16 %v418
  %v451 = vunpack.c.l.b16 %v419
  %v452 = vunpack.c.l.b16 %v420
  %v453 = vunpack.c.l.b16 %v421
  %v454 = vunpack.c.l.b16 %v422
  %v455 = vunpack.c.l.b16 %v423
  %v456 = vunpack.c.l.b16 %v424
  %v457 = vunpack.c.l.b16 %v425
  %v458 = vunpack.c.l.b16 %v426
  %v459 = vunpack.c.l.b16 %v427
  %v460 = vpack.c.b16 %v445, %v444
  %v461 = vpack.c.b16 %v447, %v446
  %v462 = vpack.c.b16 %v449, %v448
  %v463 = vpack.c.b16 %v451, %v450
  %v464 = vpack.c.b16 %v453, %v452
  %v465 = vpack.c.b16 %v455, %v454
  %v466 = vpack.c.b16 %v457, %v456
  %v467 = vpack.c.b16 %v459, %v458
  %476 = vmatprep.subr.bf16.mxu0 0
  %477 = vmatpush1.bf16.msra.mxu0 %v460
  %478 = vmatprep.subr.bf16.mxu0 0
  %479 = vmatpush1.bf16.msra.mxu0 %v461
  %480 = vmatprep.subr.bf16.mxu0 0
  %481 = vmatpush1.bf16.msra.mxu0 %v462
  %482 = vmatprep.subr.bf16.mxu0 0
  %483 = vmatpush1.bf16.msra.mxu0 %v463
  %484 = vmatprep.subr.bf16.mxu0 0
  %485 = vmatpush1.bf16.msra.mxu0 %v464
  %486 = vmatprep.subr.bf16.mxu0 0
  %487 = vmatpush1.bf16.msra.mxu0 %v465
  %488 = vmatprep.subr.bf16.mxu0 0
  %489 = vmatpush1.bf16.msra.mxu0 %v466
  %490 = vmatprep.subr.bf16.mxu0 0
  %491 = vmatpush1.bf16.msra.mxu0 %v467
  %492 = vmatprep.subr.bf16.mxu0 0
  %493 = vmatpush1.bf16.msra.mxu0 0
  %494 = vmatprep.subr.bf16.mxu0 0
  %495 = vmatpush1.bf16.msra.mxu0 0
  %496 = vmatprep.subr.bf16.mxu0 0
  %497 = vmatpush1.bf16.msra.mxu0 0
  %498 = vmatprep.subr.bf16.mxu0 0
  %499 = vmatpush1.bf16.msra.mxu0 0
  %500 = vmatprep.subr.bf16.mxu0 0
  %501 = vmatpush1.bf16.msra.mxu0 0
  %502 = vmatprep.subr.bf16.mxu0 0
  %503 = vmatpush1.bf16.msra.mxu0 0
  %504 = vmatprep.subr.bf16.mxu0 0
  %505 = vmatpush1.bf16.msra.mxu0 0
  %506 = vmatprep.subr.bf16.mxu0 0
  %507 = vmatpush1.bf16.msra.mxu0 0
  %508 = vmatprep.mubr.bf16.mxu0 0
  %509 = vmatmul.mubr.bf16.gmra.mrb[0].mxu0 %v353
  %v510 = vpop.f32.mrb[0].mxu0
  %v511 = vadd.f32 0.0, %v510
  %v512 = vpop.f32.mrb[0].mxu0
  %v513 = vpop.f32.mrb[0].mxu0
  %v514 = vadd.f32 0.0, %v513
  %v515 = vpop.f32.mrb[0].mxu0
  %516 = vdwg.mxu0
  %v533 = vunpack.c.l.b16 %v396
  %v534 = vunpack.c.l.b16 %v397
  %v535 = vunpack.c.l.b16 %v398
  %v536 = vunpack.c.l.b16 %v399
  %v537 = vunpack.c.l.b16 %v400
  %v538 = vunpack.c.l.b16 %v401
  %v539 = vunpack.c.l.b16 %v402
  %v540 = vunpack.c.l.b16 %v403
  %v541 = vunpack.c.l.b16 %v404
  %v542 = vunpack.c.l.b16 %v405
  %v543 = vunpack.c.l.b16 %v406
  %v544 = vunpack.c.l.b16 %v407
  %v545 = vunpack.c.l.b16 %v408
  %v546 = vunpack.c.l.b16 %v409
  %v547 = vunpack.c.l.b16 %v410
  %v548 = vunpack.c.l.b16 %v411
  %v549 = vpack.c.b16 %v534, %v533
  %v550 = vpack.c.b16 %v536, %v535
  %v551 = vpack.c.b16 %v538, %v537
  %v552 = vpack.c.b16 %v540, %v539
  %v553 = vpack.c.b16 %v542, %v541
  %v554 = vpack.c.b16 %v544, %v543
  %v555 = vpack.c.b16 %v546, %v545
  %v556 = vpack.c.b16 %v548, %v547
  %565 = vmatprep.subr.bf16.mxu0 0
  %566 = vmatpush1.bf16.msra.mxu0 %v549
  %567 = vmatprep.subr.bf16.mxu0 0
  %568 = vmatpush1.bf16.msra.mxu0 %v550
  %569 = vmatprep.subr.bf16.mxu0 0
  %570 = vmatpush1.bf16.msra.mxu0 %v551
  %571 = vmatprep.subr.bf16.mxu0 0
  %572 = vmatpush1.bf16.msra.mxu0 %v552
  %573 = vmatprep.subr.bf16.mxu0 0
  %574 = vmatpush1.bf16.msra.mxu0 %v553
  %575 = vmatprep.subr.bf16.mxu0 0
  %576 = vmatpush1.bf16.msra.mxu0 %v554
  %577 = vmatprep.subr.bf16.mxu0 0
  %578 = vmatpush1.bf16.msra.mxu0 %v555
  %579 = vmatprep.subr.bf16.mxu0 0
  %580 = vmatpush1.bf16.msra.mxu0 %v556
  %581 = vmatprep.subr.bf16.mxu0 0
  %582 = vmatpush1.bf16.msra.mxu0 0
  %583 = vmatprep.subr.bf16.mxu0 0
  %584 = vmatpush1.bf16.msra.mxu0 0
  %585 = vmatprep.subr.bf16.mxu0 0
  %586 = vmatpush1.bf16.msra.mxu0 0
  %587 = vmatprep.subr.bf16.mxu0 0
  %588 = vmatpush1.bf16.msra.mxu0 0
  %589 = vmatprep.subr.bf16.mxu0 0
  %590 = vmatpush1.bf16.msra.mxu0 0
  %591 = vmatprep.subr.bf16.mxu0 0
  %592 = vmatpush1.bf16.msra.mxu0 0
  %593 = vmatprep.subr.bf16.mxu0 0
  %594 = vmatpush1.bf16.msra.mxu0 0
  %595 = vmatprep.subr.bf16.mxu0 0
  %596 = vmatpush1.bf16.msra.mxu0 0
  %597 = vmatprep.mubr.bf16.mxu0 0
  %598 = vmatmul.mubr.bf16.gmra.mrb[0].mxu0 %v395
  %v599 = vpop.f32.mrb[0].mxu0
  %v600 = vadd.f32 %v511, %v599
  %v601 = vpop.f32.mrb[0].mxu0
  %v602 = vpop.f32.mrb[0].mxu0
  %v603 = vadd.f32 %v514, %v602
  %v604 = vpop.f32.mrb[0].mxu0
  %605 = vdwg.mxu0
  %v606 = vld [vmem:[%s8] sm:$0x1]
  %v608 = vlaneseq
  %v609 = vshrl.u32 %v608, 7
  %v610 = vsub.s32 0, %v609
  %v611 = vrot.slane %v606, %v610
  %v613 = vmul.f32 %v600, %v611
  %v614 = vmul.f32 %v603, %v611
  %v615 = vld [vmem:[%s9] sm:$0x1]
  %v617 = vlaneseq
  %v618 = vshrl.u32 %v617, 7
  %v619 = vsub.s32 0, %v618
  %v620 = vrot.slane %v615, %v619
  %v622 = vadd.f32 %v613, %v620
  %v623 = vadd.f32 %v614, %v620
  %v624 = vmax.f32 %v622, 0.0
  %v625 = vmax.f32 %v623, 0.0
  %v626 = vpack.c.bf16 %v625, %v624
  %627 = vmatprep.subr.bf16.mxu0 0
  %628 = vmatpush1.bf16.msra.mxu0 %v626
  %629 = vmatprep.subr.bf16.mxu0 0
  %630 = vmatpush1.bf16.msra.mxu0 0
  %631 = vmatprep.subr.bf16.mxu0 0
  %632 = vmatpush1.bf16.msra.mxu0 0
  %633 = vmatprep.subr.bf16.mxu0 0
  %634 = vmatpush1.bf16.msra.mxu0 0
  %635 = vmatprep.subr.bf16.mxu0 0
  %636 = vmatpush1.bf16.msra.mxu0 0
  %637 = vmatprep.subr.bf16.mxu0 0
  %638 = vmatpush1.bf16.msra.mxu0 0
  %639 = vmatprep.subr.bf16.mxu0 0
  %640 = vmatpush1.bf16.msra.mxu0 0
  %641 = vmatprep.subr.bf16.mxu0 0
  %642 = vmatpush1.bf16.msra.mxu0 0
  %643 = vmatprep.subr.bf16.mxu0 0
  %644 = vmatpush1.bf16.msra.mxu0 0
  %645 = vmatprep.subr.bf16.mxu0 0
  %646 = vmatpush1.bf16.msra.mxu0 0
  %647 = vmatprep.subr.bf16.mxu0 0
  %648 = vmatpush1.bf16.msra.mxu0 0
  %649 = vmatprep.subr.bf16.mxu0 0
  %650 = vmatpush1.bf16.msra.mxu0 0
  %651 = vmatprep.subr.bf16.mxu0 0
  %652 = vmatpush1.bf16.msra.mxu0 0
  %653 = vmatprep.subr.bf16.mxu0 0
  %654 = vmatpush1.bf16.msra.mxu0 0
  %655 = vmatprep.subr.bf16.mxu0 0
  %656 = vmatpush1.bf16.msra.mxu0 0
  %657 = vmatprep.subr.bf16.mxu0 0
  %658 = vmatpush1.bf16.msra.mxu0 0
  %659 = vmatprep.mubr.bf16.mxu0 0
  %660 = vmatmul.mubr.bf16.gmra.mrb[0].mxu0 %v79
  %v661 = vpop.f32.mrb[0].mxu0
  %v662 = vadd.f32 0.0, %v661
  %v663 = vpop.f32.mrb[0].mxu0
  %v664 = vpop.f32.mrb[0].mxu0
  %v665 = vadd.f32 0.0, %v664
  %v666 = vpop.f32.mrb[0].mxu0
  %667 = vdwg.mxu0
  %v668 = vpack.c.bf16 %v665, %v662
  %v669 = vld [vmem:[%s10] sm:$0xf]
  %v670 = vld [vmem:[%s10 + $0x4] sm:$0xf]
  %v671 = vld [vmem:[%s10 + $0x8] sm:$0xf]
  %v672 = vld [vmem:[%s10 + $0xc] sm:$0xf]
  %v673 = vld [vmem:[%s10 + $0x10] sm:$0xf]
  %v674 = vld [vmem:[%s10 + $0x14] sm:$0xf]
  %v675 = vld [vmem:[%s10 + $0x18] sm:$0xf]
  %v676 = vld [vmem:[%s10 + $0x1c] sm:$0xf]
  %v677 = vld [vmem:[%s10 + $0x20] sm:$0xf]
  %v678 = vld [vmem:[%s10 + $0x24] sm:$0xf]
  %v679 = vld [vmem:[%s10 + $0x28] sm:$0xf]
  %v680 = vld [vmem:[%s10 + $0x2c] sm:$0xf]
  %v681 = vld [vmem:[%s10 + $0x30] sm:$0xf]
  %v682 = vld [vmem:[%s10 + $0x34] sm:$0xf]
  %v683 = vld [vmem:[%s10 + $0x38] sm:$0xf]
  %v684 = vld [vmem:[%s10 + $0x3c] sm:$0xf]
  %v685 = vld [vmem:[%s11] sm:$0xf]
  %v686 = vld [vmem:[%s11 + $0x4] sm:$0xf]
  %v687 = vld [vmem:[%s11 + $0x8] sm:$0xf]
  %v688 = vld [vmem:[%s11 + $0xc] sm:$0xf]
  %v689 = vld [vmem:[%s11 + $0x10] sm:$0xf]
  %v690 = vld [vmem:[%s11 + $0x14] sm:$0xf]
  %v691 = vld [vmem:[%s11 + $0x18] sm:$0xf]
  %v692 = vld [vmem:[%s11 + $0x1c] sm:$0xf]
  %v693 = vld [vmem:[%s11 + $0x20] sm:$0xf]
  %v694 = vld [vmem:[%s11 + $0x24] sm:$0xf]
  %v695 = vld [vmem:[%s11 + $0x28] sm:$0xf]
  %v696 = vld [vmem:[%s11 + $0x2c] sm:$0xf]
  %v697 = vld [vmem:[%s11 + $0x30] sm:$0xf]
  %v698 = vld [vmem:[%s11 + $0x34] sm:$0xf]
  %v699 = vld [vmem:[%s11 + $0x38] sm:$0xf]
  %v700 = vld [vmem:[%s11 + $0x3c] sm:$0xf]
  %v717 = vunpack.c.l.b16 %v685
  %v718 = vunpack.c.l.b16 %v686
  %v719 = vunpack.c.l.b16 %v687
  %v720 = vunpack.c.l.b16 %v688
  %v721 = vunpack.c.l.b16 %v689
  %v722 = vunpack.c.l.b16 %v690
  %v723 = vunpack.c.l.b16 %v691
  %v724 = vunpack.c.l.b16 %v692
  %v725 = vunpack.c.l.b16 %v693
  %v726 = vunpack.c.l.b16 %v694
  %v727 = vunpack.c.l.b16 %v695
  %v728 = vunpack.c.l.b16 %v696
  %v729 = vunpack.c.l.b16 %v697
  %v730 = vunpack.c.l.b16 %v698
  %v731 = vunpack.c.l.b16 %v699
  %v732 = vunpack.c.l.b16 %v700
  %v733 = vpack.c.b16 %v718, %v717
  %v734 = vpack.c.b16 %v720, %v719
  %v735 = vpack.c.b16 %v722, %v721
  %v736 = vpack.c.b16 %v724, %v723
  %v737 = vpack.c.b16 %v726, %v725
  %v738 = vpack.c.b16 %v728, %v727
  %v739 = vpack.c.b16 %v730, %v729
  %v740 = vpack.c.b16 %v732, %v731
  %749 = vmatprep.subr.bf16.mxu0 0
  %750 = vmatpush1.bf16.msra.mxu0 %v733
  %751 = vmatprep.subr.bf16.mxu0 0
  %752 = vmatpush1.bf16.msra.mxu0 %v734
  %753 = vmatprep.subr.bf16.mxu0 0
  %754 = vmatpush1.bf16.msra.mxu0 %v735
  %755 = vmatprep.subr.bf16.mxu0 0
  %756 = vmatpush1.bf16.msra.mxu0 %v736
  %757 = vmatprep.subr.bf16.mxu0 0
  %758 = vmatpush1.bf16.msra.mxu0 %v737
  %759 = vmatprep.subr.bf16.mxu0 0
  %760 = vmatpush1.bf16.msra.mxu0 %v738
  %761 = vmatprep.subr.bf16.mxu0 0
  %762 = vmatpush1.bf16.msra.mxu0 %v739
  %763 = vmatprep.subr.bf16.mxu0 0
  %764 = vmatpush1.bf16.msra.mxu0 %v740
  %765 = vmatprep.subr.bf16.mxu0 0
  %766 = vmatpush1.bf16.msra.mxu0 0
  %767 = vmatprep.subr.bf16.mxu0 0
  %768 = vmatpush1.bf16.msra.mxu0 0
  %769 = vmatprep.subr.bf16.mxu0 0
  %770 = vmatpush1.bf16.msra.mxu0 0
  %771 = vmatprep.subr.bf16.mxu0 0
  %772 = vmatpush1.bf16.msra.mxu0 0
  %773 = vmatprep.subr.bf16.mxu0 0
  %774 = vmatpush1.bf16.msra.mxu0 0
  %775 = vmatprep.subr.bf16.mxu0 0
  %776 = vmatpush1.bf16.msra.mxu0 0
  %777 = vmatprep.subr.bf16.mxu0 0
  %778 = vmatpush1.bf16.msra.mxu0 0
  %779 = vmatprep.subr.bf16.mxu0 0
  %780 = vmatpush1.bf16.msra.mxu0 0
  %781 = vmatprep.mubr.bf16.mxu0 0
  %782 = vmatmul.mubr.bf16.gmra.mrb[0].mxu0 %v626
  %v783 = vpop.f32.mrb[0].mxu0
  %v784 = vadd.f32 0.0, %v783
  %v785 = vpop.f32.mrb[0].mxu0
  %v786 = vpop.f32.mrb[0].mxu0
  %v787 = vadd.f32 0.0, %v786
  %v788 = vpop.f32.mrb[0].mxu0
  %789 = vdwg.mxu0
  %v806 = vunpack.c.l.b16 %v669
  %v807 = vunpack.c.l.b16 %v670
  %v808 = vunpack.c.l.b16 %v671
  %v809 = vunpack.c.l.b16 %v672
  %v810 = vunpack.c.l.b16 %v673
  %v811 = vunpack.c.l.b16 %v674
  %v812 = vunpack.c.l.b16 %v675
  %v813 = vunpack.c.l.b16 %v676
  %v814 = vunpack.c.l.b16 %v677
  %v815 = vunpack.c.l.b16 %v678
  %v816 = vunpack.c.l.b16 %v679
  %v817 = vunpack.c.l.b16 %v680
  %v818 = vunpack.c.l.b16 %v681
  %v819 = vunpack.c.l.b16 %v682
  %v820 = vunpack.c.l.b16 %v683
  %v821 = vunpack.c.l.b16 %v684
  %v822 = vpack.c.b16 %v807, %v806
  %v823 = vpack.c.b16 %v809, %v808
  %v824 = vpack.c.b16 %v811, %v810
  %v825 = vpack.c.b16 %v813, %v812
  %v826 = vpack.c.b16 %v815, %v814
  %v827 = vpack.c.b16 %v817, %v816
  %v828 = vpack.c.b16 %v819, %v818
  %v829 = vpack.c.b16 %v821, %v820
  %838 = vmatprep.subr.bf16.mxu0 0
  %839 = vmatpush1.bf16.msra.mxu0 %v822
  %840 = vmatprep.subr.bf16.mxu0 0
  %841 = vmatpush1.bf16.msra.mxu0 %v823
  %842 = vmatprep.subr.bf16.mxu0 0
  %843 = vmatpush1.bf16.msra.mxu0 %v824
  %844 = vmatprep.subr.bf16.mxu0 0
  %845 = vmatpush1.bf16.msra.mxu0 %v825
  %846 = vmatprep.subr.bf16.mxu0 0
  %847 = vmatpush1.bf16.msra.mxu0 %v826
  %848 = vmatprep.subr.bf16.mxu0 0
  %849 = vmatpush1.bf16.msra.mxu0 %v827
  %850 = vmatprep.subr.bf16.mxu0 0
  %851 = vmatpush1.bf16.msra.mxu0 %v828
  %852 = vmatprep.subr.bf16.mxu0 0
  %853 = vmatpush1.bf16.msra.mxu0 %v829
  %854 = vmatprep.subr.bf16.mxu0 0
  %855 = vmatpush1.bf16.msra.mxu0 0
  %856 = vmatprep.subr.bf16.mxu0 0
  %857 = vmatpush1.bf16.msra.mxu0 0
  %858 = vmatprep.subr.bf16.mxu0 0
  %859 = vmatpush1.bf16.msra.mxu0 0
  %860 = vmatprep.subr.bf16.mxu0 0
  %861 = vmatpush1.bf16.msra.mxu0 0
  %862 = vmatprep.subr.bf16.mxu0 0
  %863 = vmatpush1.bf16.msra.mxu0 0
  %864 = vmatprep.subr.bf16.mxu0 0
  %865 = vmatpush1.bf16.msra.mxu0 0
  %866 = vmatprep.subr.bf16.mxu0 0
  %867 = vmatpush1.bf16.msra.mxu0 0
  %868 = vmatprep.subr.bf16.mxu0 0
  %869 = vmatpush1.bf16.msra.mxu0 0
  %870 = vmatprep.mubr.bf16.mxu0 0
  %871 = vmatmul.mubr.bf16.gmra.mrb[0].mxu0 %v668
  %v872 = vpop.f32.mrb[0].mxu0
  %v873 = vadd.f32 %v784, %v872
  %v874 = vpop.f32.mrb[0].mxu0
  %v875 = vpop.f32.mrb[0].mxu0
  %v876 = vadd.f32 %v787, %v875
  %v877 = vpop.f32.mrb[0].mxu0
  %878 = vdwg.mxu0
  %v879 = vld [vmem:[%s12] sm:$0x1]
  %v881 = vlaneseq
  %v882 = vshrl.u32 %v881, 7
  %v883 = vsub.s32 0, %v882
  %v884 = vrot.slane %v879, %v883
  %v886 = vmul.f32 %v873, %v884
  %v887 = vmul.f32 %v876, %v884
  %v888 = vld [vmem:[%s13] sm:$0x1]
  %v890 = vlaneseq
  %v891 = vshrl.u32 %v890, 7
  %v892 = vsub.s32 0, %v891
  %v893 = vrot.slane %v888, %v892
  %v895 = vadd.f32 %v886, %v893
  %v896 = vadd.f32 %v887, %v893
  %v897 = vmax.f32 %v895, 0.0
  %v898 = vmax.f32 %v896, 0.0
  %v899 = vpack.c.bf16 %v898, %v897
  %v900 = vld [vmem:[%s14] sm:$0xf]
  %v902 = vsel %vm77, %v900, 0
  %904 = vmatprep.subr.bf16.mxu0 0
  %905 = vmatpush1.bf16.msra.mxu0 %v899
  %906 = vmatprep.subr.bf16.mxu0 0
  %907 = vmatpush1.bf16.msra.mxu0 0
  %908 = vmatprep.subr.bf16.mxu0 0
  %909 = vmatpush1.bf16.msra.mxu0 0
  %910 = vmatprep.subr.bf16.mxu0 0
  %911 = vmatpush1.bf16.msra.mxu0 0
  %912 = vmatprep.subr.bf16.mxu0 0
  %913 = vmatpush1.bf16.msra.mxu0 0
  %914 = vmatprep.subr.bf16.mxu0 0
  %915 = vmatpush1.bf16.msra.mxu0 0
  %916 = vmatprep.subr.bf16.mxu0 0
  %917 = vmatpush1.bf16.msra.mxu0 0
  %918 = vmatprep.subr.bf16.mxu0 0
  %919 = vmatpush1.bf16.msra.mxu0 0
  %920 = vmatprep.subr.bf16.mxu0 0
  %921 = vmatpush1.bf16.msra.mxu0 0
  %922 = vmatprep.subr.bf16.mxu0 0
  %923 = vmatpush1.bf16.msra.mxu0 0
  %924 = vmatprep.subr.bf16.mxu0 0
  %925 = vmatpush1.bf16.msra.mxu0 0
  %926 = vmatprep.subr.bf16.mxu0 0
  %927 = vmatpush1.bf16.msra.mxu0 0
  %928 = vmatprep.subr.bf16.mxu0 0
  %929 = vmatpush1.bf16.msra.mxu0 0
  %930 = vmatprep.subr.bf16.mxu0 0
  %931 = vmatpush1.bf16.msra.mxu0 0
  %932 = vmatprep.subr.bf16.mxu0 0
  %933 = vmatpush1.bf16.msra.mxu0 0
  %934 = vmatprep.subr.bf16.mxu0 0
  %935 = vmatpush1.bf16.msra.mxu0 0
  %936 = vmatprep.mubr.bf16.mxu0 0
  %937 = vmatmul.mubr.bf16.gmra.mrb[0].mxu0 %v902
  %v938 = vpop.f32.mrb[0].mxu0
  %v939 = vadd.f32 0.0, %v938
  %v940 = vpop.f32.mrb[0].mxu0
  %v941 = vpop.f32.mrb[0].mxu0
  %v942 = vpop.f32.mrb[0].mxu0
  %943 = vdwg.mxu0
  %v944 = vld [vmem:[%s15] sm:$0xff]
  %946 = vset.pattern.permute.xlu0 0
  %947 = vperm.xlu0 %946, %v944
  %v948 = vpop.permute.xlu0 %947
  %v950 = vmul.f32 %v939, %v948
  %951 = vst [vmem:[%s19] sm:$0xff] %v950
  %v952 = vld [vmem:[%s16] sm:$0xff]
  %v953 = vld [vmem:[%s16 + $0x8] sm:$0xff]
  %v954 = vld [vmem:[%s16 + $0x10] sm:$0xff]
  %v955 = vld [vmem:[%s16 + $0x18] sm:$0xff]
  %v956 = vld [vmem:[%s16 + $0x20] sm:$0xff]
  %v957 = vld [vmem:[%s16 + $0x28] sm:$0xff]
  %v958 = vld [vmem:[%s16 + $0x30] sm:$0xff]
  %v959 = vld [vmem:[%s16 + $0x38] sm:$0xff]
  %v960 = vld [vmem:[%s16 + $0x40] sm:$0xff]
  %v961 = vld [vmem:[%s16 + $0x48] sm:$0xff]
  %v962 = vld [vmem:[%s16 + $0x50] sm:$0xff]
  %v963 = vld [vmem:[%s16 + $0x58] sm:$0xff]
  %v964 = vld [vmem:[%s16 + $0x60] sm:$0xff]
  %v965 = vld [vmem:[%s16 + $0x68] sm:$0xff]
  %v966 = vld [vmem:[%s16 + $0x70] sm:$0xff]
  %v967 = vld [vmem:[%s16 + $0x78] sm:$0xff]
  %v968 = vld [vmem:[%s17] sm:$0x1]
  %v970 = vlaneseq
  %v971 = vshrl.u32 %v970, 7
  %v972 = vsub.s32 0, %v971
  %v973 = vrot.slane %v968, %v972
  %975 = vmatprep.subr.mxu0 0.0
  %976 = vmatpush1.msra.mxu0 %v952
  %977 = vmatprep.subr.mxu0 0.0
  %978 = vmatpush1.msra.mxu0 %v953
  %979 = vmatprep.subr.mxu0 0.0
  %980 = vmatpush1.msra.mxu0 %v954
  %981 = vmatprep.subr.mxu0 0.0
  %982 = vmatpush1.msra.mxu0 %v955
  %983 = vmatprep.subr.mxu0 0.0
  %984 = vmatpush1.msra.mxu0 %v956
  %985 = vmatprep.subr.mxu0 0.0
  %986 = vmatpush1.msra.mxu0 %v957
  %987 = vmatprep.subr.mxu0 0.0
  %988 = vmatpush1.msra.mxu0 %v958
  %989 = vmatprep.subr.mxu0 0.0
  %990 = vmatpush1.msra.mxu0 %v959
  %991 = vmatprep.subr.mxu0 0.0
  %992 = vmatpush1.msra.mxu0 %v960
  %993 = vmatprep.subr.mxu0 0.0
  %994 = vmatpush1.msra.mxu0 %v961
  %995 = vmatprep.subr.mxu0 0.0
  %996 = vmatpush1.msra.mxu0 %v962
  %997 = vmatprep.subr.mxu0 0.0
  %998 = vmatpush1.msra.mxu0 %v963
  %999 = vmatprep.subr.mxu0 0.0
  %1000 = vmatpush1.msra.mxu0 %v964
  %1001 = vmatprep.subr.mxu0 0.0
  %1002 = vmatpush1.msra.mxu0 %v965
  %1003 = vmatprep.subr.mxu0 0.0
  %1004 = vmatpush1.msra.mxu0 %v966
  %1005 = vmatprep.subr.mxu0 0.0
  %1006 = vmatpush1.msra.mxu0 %v967
  %1007 = vmatprep.subr.mxu0 0.0
  %1008 = vmatpush1.msra.mxu0 0.0
  %1009 = vmatprep.subr.mxu0 0.0
  %1010 = vmatpush1.msra.mxu0 0.0
  %1011 = vmatprep.subr.mxu0 0.0
  %1012 = vmatpush1.msra.mxu0 0.0
  %1013 = vmatprep.subr.mxu0 0.0
  %1014 = vmatpush1.msra.mxu0 0.0
  %1015 = vmatprep.subr.mxu0 0.0
  %1016 = vmatpush1.msra.mxu0 0.0
  %1017 = vmatprep.subr.mxu0 0.0
  %1018 = vmatpush1.msra.mxu0 0.0
  %1019 = vmatprep.subr.mxu0 0.0
  %1020 = vmatpush1.msra.mxu0 0.0
  %1021 = vmatprep.subr.mxu0 0.0
  %1022 = vmatpush1.msra.mxu0 0.0
  %1023 = vmatprep.subr.mxu0 0.0
  %1024 = vmatpush1.msra.mxu0 0.0
  %1025 = vmatprep.subr.mxu0 0.0
  %1026 = vmatpush1.msra.mxu0 0.0
  %1027 = vmatprep.subr.mxu0 0.0
  %1028 = vmatpush1.msra.mxu0 0.0
  %1029 = vmatprep.subr.mxu0 0.0
  %1030 = vmatpush1.msra.mxu0 0.0
  %1031 = vmatprep.subr.mxu0 0.0
  %1032 = vmatpush1.msra.mxu0 0.0
  %1033 = vmatprep.subr.mxu0 0.0
  %1034 = vmatpush1.msra.mxu0 0.0
  %1035 = vmatprep.subr.mxu0 0.0
  %1036 = vmatpush1.msra.mxu0 0.0
  %1037 = vmatprep.subr.mxu0 0.0
  %1038 = vmatpush1.msra.mxu0 0.0
  %1039 = vmatprep.mubr.f32.mxu0 0.0
  %1040 = vmatmul.mubr.f32.gmra.mrb[0].mxu0 %v950
  %v1041 = vpop.f32.mrb[0].mxu0
  %v1042 = vadd.f32 %v973, %v1041
  %v1043 = vpop.f32.mrb[0].mxu0
  %1044 = vdwg.mxu0
  %1045 = vst [vmem:[%s18] sm:$0xff] %v1042
  // Predicated region
  $region74: #{upfd_graphsage_forward.1} parent=0 // pred_check
    _
  $region75: #{upfd_graphsage_forward.1} parent=0 // pred_check_branch
    %1047 = sbr.rel (0) target = $region77
  $region76: #{upfd_graphsage_forward.1} parent=0 // pred_region
    _
  $region77: #{upfd_graphsage_forward.1} parent=0 // pred_fallthru
    _
  // Predicated region
  $region78: #{upfd_graphsage_forward.1} parent=0 // pred_check
    _
  $region79: #{upfd_graphsage_forward.1} parent=0 // pred_check_branch
    %1049 = sbr.rel (0) target = $region81
  $region80: #{upfd_graphsage_forward.1} parent=0 // pred_region
    _
  $region81: #{upfd_graphsage_forward.1} parent=0 // pred_fallthru
    _
  // Predicated region
  $region82: #{upfd_graphsage_forward.1} parent=0 // pred_check
    _
  $region83: #{upfd_graphsage_forward.1} parent=0 // pred_check_branch
    %1051 = sbr.rel (0) target = $region85
  $region84: #{upfd_graphsage_forward.1} parent=0 // pred_region
    _
  $region85: #{upfd_graphsage_forward.1} parent=0 // pred_fallthru
    _
  // Predicated region
  $region86: #{upfd_graphsage_forward.1} parent=0 // pred_check
    _
  $region87: #{upfd_graphsage_forward.1} parent=0 // pred_check_branch
    %1053 = sbr.rel (0) target = $region89
  $region88: #{upfd_graphsage_forward.1} parent=0 // pred_region
    _
  $region89: #{upfd_graphsage_forward.1} parent=0 // pred_fallthru
    _

</llo_original>
